<compile_context>
chip_gen: v7x
topology: tpu7x:2x2x1
jax: 0.10.0
libtpu: 0.0.40
codegen_flags: <defaults>
</compile_context>

<pallas_src>
import jax
import jax.numpy as jnp
from jax import lax
from jax.experimental import pallas as pl
from jax.experimental.pallas import tpu as pltpu


def _make_seg_max_kernel(time_block, neg):
    """Grid = (nc_tile, chunk).  o_ref (BN, HW) stays resident across consecutive
    chunks of the same segment and accumulates a running max on the VPU."""

    def kernel(blk_ref, seg_ref, voff_ref, vlen_ref, first_ref, x_ref, o_ref):
        ci = pl.program_id(1)

        @pl.when(first_ref[ci] == 1)           # first chunk of this segment
        def _init():
            o_ref[...] = jnp.full(o_ref.shape, neg, o_ref.dtype)

        voff = voff_ref[ci]                     # valid frame range inside this block
        vend = voff + vlen_ref[ci]
        neg_c = jnp.asarray(neg, o_ref.dtype)

        acc = o_ref[...]
        # Fully unrolled elementwise running max over the TB time steps of the chunk
        # (static slices, stays on the VPU; invalid steps masked to neg).
        for i in range(time_block):
            ok = jnp.logical_and(i >= voff, i < vend)
            acc = jnp.maximum(acc, jnp.where(ok, x_ref[:, i, :], neg_c))
        o_ref[...] = acc

    return kernel


def pack_sequence_max_pool(seqs, seqL=None, *, time_block=8,
                           target_chunk_bytes=2 << 20,
                           vmem_block_budget=40 << 20):
    """Forward of PackSequenceWrapper(torch.max)(seqs, seqL, dim=2) -> pooled values.

    seqs: (n, c, s, h, w)
    seqL: host-side list of segment lengths along dim 2 (static Python ints), or None.
    returns: (len(seqL) * n, c, h, w)   (or (n, c, h, w) when seqL is None)
    """
    n, c, s, h, w = seqs.shape
    seg_lens = [s] if seqL is None else [int(v) for v in seqL]
    assert all(l >= 1 for l in seg_lens), "every packed segment must have length >= 1"
    assert sum(seg_lens) <= s, "sum(seqL) must not exceed the sequence length s"
    # Note: if sum(seqL) < s the trailing frames are silently ignored, matching the
    # PyTorch packing semantics.

    starts, acc = [], 0
    for l in seg_lens:
        starts.append(acc)
        acc += l
    num_segs = len(seg_lens)

    NC, HW = n * c, h * w
    dtype = seqs.dtype
    item = jnp.dtype(dtype).itemsize
    sub = 8 * max(1, 4 // item)                  # sublane tile multiple for this dtype

    # Free row-major reshape: lane dim becomes h*w (e.g. 64*44 = 2816 = 22*128).
    x = seqs.reshape(NC, s, HW)

    # --- time-block size (second-last input block dim): multiple of `sub` or full s.
    TB = min(int(time_block), s)
    if TB < s:
        TB = max(sub, (TB // sub) * sub)
        if TB >= s:
            TB = s

    # --- n*c tile size: bound VMEM = out block + 2x double-buffered input chunks.
    row_in = TB * HW * item
    row_out = HW * item
    if NC <= sub:
        BN = NC
    else:
        BN = max(sub, min(NC, int(target_chunk_bytes // max(row_in, 1))))
        BN -= BN % sub
        BN = max(BN, sub)
        while BN > sub and 2 * BN * (row_in + row_out) > vmem_block_budget:
            BN = max(sub, ((BN // 2) // sub) * sub)
        BN = min(BN, NC)

    # --- flattened chunk schedule (host-side, static): for each segment, the TB-sized
    # time blocks it overlaps, plus the valid range inside each block.
    blk_l, seg_l, voff_l, vlen_l, first_l = [], [], [], [], []
    for g, (st, ln) in enumerate(zip(starts, seg_lens)):
        end = st + ln
        b0, b1 = st // TB, (end - 1) // TB
        for j, b in enumerate(range(b0, b1 + 1)):
            bs = b * TB
            v0 = max(st, bs) - bs
            v1 = min(end, bs + TB) - bs
            blk_l.append(b)
            seg_l.append(g)
            voff_l.append(v0)
            vlen_l.append(v1 - v0)
            first_l.append(1 if j == 0 else 0)
    total_chunks = len(blk_l)

    blk_a = jnp.asarray(blk_l, jnp.int32)
    seg_a = jnp.asarray(seg_l, jnp.int32)
    voff_a = jnp.asarray(voff_l, jnp.int32)
    vlen_a = jnp.asarray(vlen_l, jnp.int32)
    first_a = jnp.asarray(first_l, jnp.int32)

    if jnp.issubdtype(dtype, jnp.floating):
        neg = -jnp.inf
    else:
        neg = int(jnp.iinfo(dtype).min)

    def x_map(nc, ci, blk, seg, voff, vlen, first):
        return (nc, blk[ci], 0)

    def o_map(nc, ci, blk, seg, voff, vlen, first):
        return (seg[ci], nc, 0)

    grid = (pl.cdiv(NC, BN), total_chunks)

    in_block_bytes = BN * TB * HW * item
    out_block_bytes = BN * HW * item
    vmem_limit = int(min(max(4 * (in_block_bytes + out_block_bytes) + (1 << 20),
                             16 << 20), 64 << 20))

    valid_frames = sum(seg_lens)
    cost = pl.CostEstimate(
        flops=NC * valid_frames * HW,            # VPU compares
        transcendentals=0,
        bytes_accessed=(NC * valid_frames * HW + num_segs * NC * HW) * item,
    )

    out = pl.pallas_call(
        _make_seg_max_kernel(TB, neg),
        out_shape=jax.ShapeDtypeStruct((num_segs, NC, HW), dtype),
        grid_spec=pltpu.PrefetchScalarGridSpec(
            num_scalar_prefetch=5,
            grid=grid,
            in_specs=[pl.BlockSpec((BN, TB, HW), x_map)],
            out_specs=pl.BlockSpec((None, BN, HW), o_map),
        ),
        compiler_params=pltpu.CompilerParams(
            dimension_semantics=("parallel", "arbitrary"),
            vmem_limit_bytes=vmem_limit,
        ),
        cost_estimate=cost,
    )(blk_a, seg_a, voff_a, vlen_a, first_a, x)

    out = out.reshape(num_segs, n, c, h, w)
    if seqL is None:
        return out.reshape(n, c, h, w)
    # torch.cat(rets): segment-major, batch within each segment (contiguous merge).
    return out.reshape(num_segs * n, c, h, w)


if __name__ == "__main__":
    key = jax.random.PRNGKey(0)

    def ref_pool(seqs, seqL):
        # Pure-JAX reference of the PyTorch forward (pooling_func = max over dim 2).
        if seqL is None:
            return jnp.max(seqs, axis=2)
        rets, start = [], 0
        for l in seqL:
            rets.append(jnp.max(lax.slice_in_dim(seqs, start, start + l, axis=2), axis=2))
            start += l
        return jnp.concatenate(rets, axis=0)

    n, c, s, h, w = 2, 4, 8, 16, 16
    k1, k2 = jax.random.split(key)
    seqs = jax.random.normal(k1, (n, c, s, h, w), dtype=jnp.float32)
    seqL = [3, 5]

    # Test 1: packed segments.
    y = jax.block_until_ready(pack_sequence_max_pool(seqs, seqL))
    y_ref = ref_pool(seqs, seqL)
    assert y.shape == y_ref.shape == (len(seqL) * n, c, h, w)
    assert jnp.allclose(y, y_ref)

    # Test 2: seqL is None -> plain pooling over the whole sequence axis.
    y_none = jax.block_until_ready(pack_sequence_max_pool(seqs, None))
    assert y_none.shape == (n, c, h, w)
    assert jnp.allclose(y_none, ref_pool(seqs, None))

    # Test 3: segments straddling time-chunk boundaries (multi-chunk accumulation).
    s2 = 16
    seqs2 = jax.random.normal(k2, (n, c, s2, h, w), dtype=jnp.float32)
    seqL2 = [5, 7, 4]
    y2 = jax.block_until_ready(pack_sequence_max_pool(seqs2, seqL2, time_block=8))
    assert jnp.allclose(y2, ref_pool(seqs2, seqL2))

    # Test 4: bf16 activations stay bf16 end-to-end (max is exact in bf16).
    seqs_bf = seqs.astype(jnp.bfloat16)
    y_bf = jax.block_until_ready(pack_sequence_max_pool(seqs_bf, seqL))
    assert y_bf.dtype == jnp.bfloat16
    assert jnp.array_equal(y_bf, ref_pool(seqs_bf, seqL))

    print("KERNEL_OK")
</pallas_src>

<mosaic_0001>
module attributes {stable_mosaic.version = 11 : i64} {
  func.func @kernel(%arg0: i32, %arg1: i32, %arg2: memref<2xi32, #tpu.memory_space<smem>>, %arg3: memref<2xi32, #tpu.memory_space<smem>>, %arg4: memref<2xi32, #tpu.memory_space<smem>>, %arg5: memref<2xi32, #tpu.memory_space<smem>>, %arg6: memref<2xi32, #tpu.memory_space<smem>>, %arg7: memref<8x8x256xf32, #tpu.memory_space<vmem>>, %arg8: memref<1x8x256xf32, #tpu.memory_space<vmem>>) attributes {dimension_semantics = [#tpu.dimension_semantics<parallel>, #tpu.dimension_semantics<arbitrary>], iteration_bounds = array<i64: 1, 2>, scalar_prefetch = 5 : i64, scratch_operands = 0 : i64, tpu.core_type = #tpu.core_type<tc>, window_params = [{transform_indices = @transform_0, window_bounds = array<i64: 8, 8, 256>}, {transform_indices = @transform_1, window_bounds = array<i64: 1, 8, 256>}]} {
    %0 = arith.index_cast %arg1 : i32 to index
    %1 = memref.load %arg6[%0] : memref<2xi32, #tpu.memory_space<smem>>
    %c1_i32 = arith.constant 1 : i32
    %2 = arith.cmpi eq, %1, %c1_i32 : i32
    %3 = arith.extui %2 : i1 to i32
    %c0_i32 = arith.constant 0 : i32
    %4 = arith.cmpi ne, %3, %c0_i32 : i32
    scf.if %4 {
      %cst_39 = arith.constant 0xFF800000 : f32
      %79 = vector.broadcast %cst_39 : f32 to vector<8x256xf32>
      %c0_40 = arith.constant 0 : index
      %c0_41 = arith.constant 0 : index
      %c0_42 = arith.constant 0 : index
      %80 = vector.load %arg8[%c0_40, %c0_41, %c0_42] : memref<1x8x256xf32, #tpu.memory_space<vmem>>, vector<1x8x256xf32>
      %81 = vector.shape_cast %80 : vector<1x8x256xf32> to vector<8x256xf32>
      %82 = vector.shape_cast %79 : vector<8x256xf32> to vector<1x8x256xf32>
      tpu.vector_store %arg8[%c0_40, %c0_41, %c0_42], %82 {strides = array<i32>} : memref<1x8x256xf32, #tpu.memory_space<vmem>>, vector<1x8x256xf32>,
    } else {
    }
    %5 = arith.index_cast %arg1 : i32 to index
    %6 = memref.load %arg4[%5] : memref<2xi32, #tpu.memory_space<smem>>
    %7 = arith.index_cast %arg1 : i32 to index
    %8 = memref.load %arg5[%7] : memref<2xi32, #tpu.memory_space<smem>>
    %9 = arith.addi %6, %8 : i32
    %c0 = arith.constant 0 : index
    %c0_0 = arith.constant 0 : index
    %c0_1 = arith.constant 0 : index
    %10 = vector.load %arg8[%c0, %c0_0, %c0_1] : memref<1x8x256xf32, #tpu.memory_space<vmem>>, vector<1x8x256xf32>
    %11 = vector.shape_cast %10 : vector<1x8x256xf32> to vector<8x256xf32>
    %c0_i32_2 = arith.constant 0 : i32
    %12 = arith.cmpi sle, %6, %c0_i32_2 : i32
    %c0_i32_3 = arith.constant 0 : i32
    %13 = arith.cmpi sgt, %9, %c0_i32_3 : i32
    %14 = arith.andi %12, %13 : i1
    %c0_4 = arith.constant 0 : index
    %c0_5 = arith.constant 0 : index
    %c0_6 = arith.constant 0 : index
    %15 = vector.load %arg7[%c0_4, %c0_5, %c0_6] : memref<8x8x256xf32, #tpu.memory_space<vmem>>, vector<8x1x256xf32>
    %16 = vector.shape_cast %15 : vector<8x1x256xf32> to vector<8x256xf32>
    %cst = arith.constant 0xFF800000 : f32
    %17 = vector.broadcast %cst : f32 to vector<8x256xf32>
    %18 = arith.select %14, %16, %17 : vector<8x256xf32>
    %19 = arith.maximumf %11, %18 : vector<8x256xf32>
    %c1_i32_7 = arith.constant 1 : i32
    %20 = arith.cmpi sle, %6, %c1_i32_7 : i32
    %c1_i32_8 = arith.constant 1 : i32
    %21 = arith.cmpi sgt, %9, %c1_i32_8 : i32
    %22 = arith.andi %20, %21 : i1
    %c0_9 = arith.constant 0 : index
    %c1 = arith.constant 1 : index
    %c0_10 = arith.constant 0 : index
    %23 = vector.load %arg7[%c0_9, %c1, %c0_10] : memref<8x8x256xf32, #tpu.memory_space<vmem>>, vector<8x1x256xf32>
    %24 = vector.shape_cast %23 : vector<8x1x256xf32> to vector<8x256xf32>
    %cst_11 = arith.constant 0xFF800000 : f32
    %25 = vector.broadcast %cst_11 : f32 to vector<8x256xf32>
    %26 = arith.select %22, %24, %25 : vector<8x256xf32>
    %27 = arith.maximumf %19, %26 : vector<8x256xf32>
    %c2_i32 = arith.constant 2 : i32
    %28 = arith.cmpi sle, %6, %c2_i32 : i32
    %c2_i32_12 = arith.constant 2 : i32
    %29 = arith.cmpi sgt, %9, %c2_i32_12 : i32
    %30 = arith.andi %28, %29 : i1
    %c0_13 = arith.constant 0 : index
    %c2 = arith.constant 2 : index
    %c0_14 = arith.constant 0 : index
    %31 = vector.load %arg7[%c0_13, %c2, %c0_14] : memref<8x8x256xf32, #tpu.memory_space<vmem>>, vector<8x1x256xf32>
    %32 = vector.shape_cast %31 : vector<8x1x256xf32> to vector<8x256xf32>
    %cst_15 = arith.constant 0xFF800000 : f32
    %33 = vector.broadcast %cst_15 : f32 to vector<8x256xf32>
    %34 = arith.select %30, %32, %33 : vector<8x256xf32>
    %35 = arith.maximumf %27, %34 : vector<8x256xf32>
    %c3_i32 = arith.constant 3 : i32
    %36 = arith.cmpi sle, %6, %c3_i32 : i32
    %c3_i32_16 = arith.constant 3 : i32
    %37 = arith.cmpi sgt, %9, %c3_i32_16 : i32
    %38 = arith.andi %36, %37 : i1
    %c0_17 = arith.constant 0 : index
    %c3 = arith.constant 3 : index
    %c0_18 = arith.constant 0 : index
    %39 = vector.load %arg7[%c0_17, %c3, %c0_18] : memref<8x8x256xf32, #tpu.memory_space<vmem>>, vector<8x1x256xf32>
    %40 = vector.shape_cast %39 : vector<8x1x256xf32> to vector<8x256xf32>
    %cst_19 = arith.constant 0xFF800000 : f32
    %41 = vector.broadcast %cst_19 : f32 to vector<8x256xf32>
    %42 = arith.select %38, %40, %41 : vector<8x256xf32>
    %43 = arith.maximumf %35, %42 : vector<8x256xf32>
    %c4_i32 = arith.constant 4 : i32
    %44 = arith.cmpi sle, %6, %c4_i32 : i32
    %c4_i32_20 = arith.constant 4 : i32
    %45 = arith.cmpi sgt, %9, %c4_i32_20 : i32
    %46 = arith.andi %44, %45 : i1
    %c0_21 = arith.constant 0 : index
    %c4 = arith.constant 4 : index
    %c0_22 = arith.constant 0 : index
    %47 = vector.load %arg7[%c0_21, %c4, %c0_22] : memref<8x8x256xf32, #tpu.memory_space<vmem>>, vector<8x1x256xf32>
    %48 = vector.shape_cast %47 : vector<8x1x256xf32> to vector<8x256xf32>
    %cst_23 = arith.constant 0xFF800000 : f32
    %49 = vector.broadcast %cst_23 : f32 to vector<8x256xf32>
    %50 = arith.select %46, %48, %49 : vector<8x256xf32>
    %51 = arith.maximumf %43, %50 : vector<8x256xf32>
    %c5_i32 = arith.constant 5 : i32
    %52 = arith.cmpi sle, %6, %c5_i32 : i32
    %c5_i32_24 = arith.constant 5 : i32
    %53 = arith.cmpi sgt, %9, %c5_i32_24 : i32
    %54 = arith.andi %52, %53 : i1
    %c0_25 = arith.constant 0 : index
    %c5 = arith.constant 5 : index
    %c0_26 = arith.constant 0 : index
    %55 = vector.load %arg7[%c0_25, %c5, %c0_26] : memref<8x8x256xf32, #tpu.memory_space<vmem>>, vector<8x1x256xf32>
    %56 = vector.shape_cast %55 : vector<8x1x256xf32> to vector<8x256xf32>
    %cst_27 = arith.constant 0xFF800000 : f32
    %57 = vector.broadcast %cst_27 : f32 to vector<8x256xf32>
    %58 = arith.select %54, %56, %57 : vector<8x256xf32>
    %59 = arith.maximumf %51, %58 : vector<8x256xf32>
    %c6_i32 = arith.constant 6 : i32
    %60 = arith.cmpi sle, %6, %c6_i32 : i32
    %c6_i32_28 = arith.constant 6 : i32
    %61 = arith.cmpi sgt, %9, %c6_i32_28 : i32
    %62 = arith.andi %60, %61 : i1
    %c0_29 = arith.constant 0 : index
    %c6 = arith.constant 6 : index
    %c0_30 = arith.constant 0 : index
    %63 = vector.load %arg7[%c0_29, %c6, %c0_30] : memref<8x8x256xf32, #tpu.memory_space<vmem>>, vector<8x1x256xf32>
    %64 = vector.shape_cast %63 : vector<8x1x256xf32> to vector<8x256xf32>
    %cst_31 = arith.constant 0xFF800000 : f32
    %65 = vector.broadcast %cst_31 : f32 to vector<8x256xf32>
    %66 = arith.select %62, %64, %65 : vector<8x256xf32>
    %67 = arith.maximumf %59, %66 : vector<8x256xf32>
    %c7_i32 = arith.constant 7 : i32
    %68 = arith.cmpi sle, %6, %c7_i32 : i32
    %c7_i32_32 = arith.constant 7 : i32
    %69 = arith.cmpi sgt, %9, %c7_i32_32 : i32
    %70 = arith.andi %68, %69 : i1
    %c0_33 = arith.constant 0 : index
    %c7 = arith.constant 7 : index
    %c0_34 = arith.constant 0 : index
    %71 = vector.load %arg7[%c0_33, %c7, %c0_34] : memref<8x8x256xf32, #tpu.memory_space<vmem>>, vector<8x1x256xf32>
    %72 = vector.shape_cast %71 : vector<8x1x256xf32> to vector<8x256xf32>
    %cst_35 = arith.constant 0xFF800000 : f32
    %73 = vector.broadcast %cst_35 : f32 to vector<8x256xf32>
    %74 = arith.select %70, %72, %73 : vector<8x256xf32>
    %75 = arith.maximumf %67, %74 : vector<8x256xf32>
    %c0_36 = arith.constant 0 : index
    %c0_37 = arith.constant 0 : index
    %c0_38 = arith.constant 0 : index
    %76 = vector.load %arg8[%c0_36, %c0_37, %c0_38] : memref<1x8x256xf32, #tpu.memory_space<vmem>>, vector<1x8x256xf32>
    %77 = vector.shape_cast %76 : vector<1x8x256xf32> to vector<8x256xf32>
    %78 = vector.shape_cast %75 : vector<8x256xf32> to vector<1x8x256xf32>
    tpu.vector_store %arg8[%c0_36, %c0_37, %c0_38], %78 {strides = array<i32>} : memref<1x8x256xf32, #tpu.memory_space<vmem>>, vector<1x8x256xf32>,
    return
  }
  func.func @transform_0(%arg0: i32, %arg1: i32, %arg2: memref<2xi32, #tpu.memory_space<smem>>, %arg3: memref<2xi32, #tpu.memory_space<smem>>, %arg4: memref<2xi32, #tpu.memory_space<smem>>, %arg5: memref<2xi32, #tpu.memory_space<smem>>, %arg6: memref<2xi32, #tpu.memory_space<smem>>) -> (i32, i32, i32) {
    %0 = arith.index_cast %arg1 : i32 to index
    %1 = memref.load %arg2[%0] : memref<2xi32, #tpu.memory_space<smem>>
    %c0_i32 = arith.constant 0 : i32
    %c0_i32_0 = arith.constant 0 : i32
    return %arg0, %1, %c0_i32 : i32, i32, i32
  }
  func.func @transform_1(%arg0: i32, %arg1: i32, %arg2: memref<2xi32, #tpu.memory_space<smem>>, %arg3: memref<2xi32, #tpu.memory_space<smem>>, %arg4: memref<2xi32, #tpu.memory_space<smem>>, %arg5: memref<2xi32, #tpu.memory_space<smem>>, %arg6: memref<2xi32, #tpu.memory_space<smem>>) -> (i32, i32, i32) {
    %0 = arith.index_cast %arg1 : i32 to index
    %1 = memref.load %arg3[%0] : memref<2xi32, #tpu.memory_space<smem>>
    %c0_i32 = arith.constant 0 : i32
    %c0_i32_0 = arith.constant 0 : i32
    return %1, %arg0, %c0_i32 : i32, i32, i32
  }
}

</mosaic_0001>

<llo_original>
// kernel: tpu_custom_call.1
$region0: #{tpu_custom_call.1}
  #allocation0 [shape = 'u32[]', space=smem, size = 0x4, offset = 0x4, fixed_abs, tag = 'smem constant byte address 0x4 - core index']
  #allocation1 [shape = 'u32[144,128]{1,0:T(1,128)}', space=vmem, size = 0x12000, scoped, tag = 'internal scratch']
  #allocation2 [shape = 's32[1]{0}', space=sflag, size = 0x4, scoped, tag = 'scoped memory for tpu_custom_call.1']
  #allocation3 [shape = 'u8[512]{0}', space=smem, size = 0x200, scoped, tag = 'prefetched SMEM operand 0']
  #allocation4 [shape = 'u8[512]{0}', space=smem, size = 0x200, scoped, tag = 'prefetched SMEM operand 1']
  #allocation5 [shape = 'u8[512]{0}', space=smem, size = 0x200, scoped, tag = 'prefetched SMEM operand 2']
  #allocation6 [shape = 'u8[512]{0}', space=smem, size = 0x200, scoped, tag = 'prefetched SMEM operand 3']
  #allocation7 [shape = 'u8[512]{0}', space=smem, size = 0x200, scoped, tag = 'prefetched SMEM operand 4']
  %s0 = inlined_call_operand.hbm [shape: s32[2], index: 0, kind: input, shape index: {}]
  %s1 = inlined_call_operand.vmem [shape: s32[2], index: 1, kind: input, shape index: {}]
  %s2 = inlined_call_operand.vmem [shape: s32[2], index: 2, kind: input, shape index: {}]
  %s3 = inlined_call_operand.vmem [shape: s32[2], index: 3, kind: input, shape index: {}]
  %s4 = inlined_call_operand.vmem [shape: s32[2], index: 4, kind: input, shape index: {}]
  %s5 = inlined_call_operand.hbm [shape: f32[8,8,256], index: 5, kind: input, shape index: {}]
  %s6 = inlined_call_operand.hbm [shape: f32[2,8,256], index: 6, kind: output, shape index: {}]
  %s7 = sld [smem:[#allocation0]]
  $region45: #{tpu_custom_call.1} parent=0
    _
  %s9 = ssub.s32 1, %s7
  %s10 = scalar_select 0, %s9, %s7
  %12 = dma.hbm_to_smem %s0, 16, [#allocation3], [#allocation2]
  %s13 = sshll.u32 %s1, 4
  %s14 = int_to_ptr.vmem [resolvable:$true] %s13
  %16 = dma.vmem_to_smem %s14, 16, [#allocation4], [#allocation2]
  %s17 = sshll.u32 %s2, 4
  %s18 = int_to_ptr.vmem [resolvable:$true] %s17
  %20 = dma.vmem_to_smem %s18, 16, [#allocation5], [#allocation2]
  %s21 = sshll.u32 %s3, 4
  %s22 = int_to_ptr.vmem [resolvable:$true] %s21
  %24 = dma.vmem_to_smem %s22, 16, [#allocation6], [#allocation2]
  %s25 = sshll.u32 %s4, 4
  %s26 = int_to_ptr.vmem [resolvable:$true] %s25
  %28 = dma.vmem_to_smem %s26, 16, [#allocation7], [#allocation2]
  %29 = dma.done [#allocation2], 80
  %30 = sfence
  $region1: #{tpu_custom_call.1} parent=0
    #allocation8 [shape = 'u8[131072]{0}', space=vmem, size = 0x20000, scoped, tag = 'input window, operand 5']
    #allocation9 [shape = 's32[2]{0}', space=sflag, size = 0x8, scoped, tag = 'scoped memory for tpu_custom_call.1']
    #allocation10 [shape = 's32[2]{0}', space=sflag, size = 0x8, scoped, tag = 'scoped memory for tpu_custom_call.1']
    #allocation11 [shape = 'u8[16384]{0}', space=vmem, size = 0x4000, scoped, tag = 'output window, operand 0']
    %31 = vsyncpa [#allocation9], 0
    %s32 = scalar_lea.sflag [#allocation9], 1
    %33 = vsyncpa %s32, 0
    %34 = vsyncpa [#allocation10], 0
    %s35 = scalar_lea.sflag [#allocation10], 1
    %36 = vsyncpa %s35, 0
    loop: start=0, step=1, limit=4
    $region2: #{tpu_custom_call.1} parent=1 // loop_pre_header
      _
    $region3: #{tpu_custom_call.1} parent=1 // loop_header
      %s38 = sphi 0, %s42
      %p39 = scmp.ge.s32.totalorder %s38, 4
      %s45 = sphi 0, %s57
      %s46 = sphi 0, %s53
      %s47 = sphi 0, %s45
      %s48 = sphi 0, %s46
      %s49 = sphi 0, %s47
      %s50 = sphi 0, %s48
      %s64 = sphi 0, %s66
      %s67 = sphi 0, %s64
      %s68 = sphi 0, %s67
      %s84 = sphi 0, %s68
      %s94 = sphi 0, %s96
      %s97 = sphi 0, %s94
      %s98 = sphi 0, %s97
      %s114 = sphi 0, %s98
    $region4: #{tpu_custom_call.1} parent=1 // loop_header_branch
      %41 = sbr.rel (%p39) target = $region8
    $region5: #{tpu_custom_call.1} parent=1 // loop_body
      %s43 = ssub.s32 %s38, 1
      %s44 = ssub.s32 %s38, 2
      %s51 = sadd.s32 1, %s46
      %p52 = scmp.ge.s32.totalorder %s51, 2
      %s53 = scalar_select %p52, 0, %s51
      %s54 = sadd.s32 1, %s45
      %s55 = scalar_select %p52, %s54, %s45
      %p56 = scmp.ge.s32.totalorder %s55, 1
      %s57 = scalar_select %p56, 0, %s55
      %s58 = sld [smem:[#allocation3 + %s46]]
      %s59 = sld [smem:[#allocation3 + %s53]]
      %s60 = ssub.s32 %s45, %s57
      %s61 = ssub.s32 %s58, %s59
      %s62 = sor.u32 %s60, %s61
      %p63 = scmp.eq.s32.totalorder %s62, 0
      %s65 = sadd.s32 %s64, 1
      %s66 = scalar_select %p63, %s64, %s65
      %p69 = pneg %p63
      %p70 = scmp.eq.s32.totalorder %s38, 1
      %p71 = por %p69, %p70
      %p72 = scmp.ne.s32.totalorder %s64, %s67
      %p73 = scmp.eq.s32.totalorder %s38, 0
      %p74 = por %p72, %p73
      %p75 = scmp.ne.s32.totalorder %s64, %s67
      %p76 = scmp.eq.s32.totalorder %s43, 1
      %p77 = por %p75, %p76
      %p78 = scmp.ne.s32.totalorder %s67, %s68
      %p79 = scmp.eq.s32.totalorder %s43, 0
      %p80 = por %p78, %p79
      %p81 = scmp.ne.s32.totalorder %s67, %s68
      %p82 = scmp.eq.s32.totalorder %s44, 1
      %p83 = por %p81, %p82
      %p85 = scmp.ne.s32.totalorder %s68, %s84
      %p86 = scmp.eq.s32.totalorder %s44, 0
      %p87 = por %p85, %p86
      %s88 = sld [smem:[#allocation4 + %s46]]
      %s89 = sld [smem:[#allocation4 + %s53]]
      %s90 = ssub.s32 %s88, %s89
      %s91 = ssub.s32 %s45, %s57
      %s92 = sor.u32 %s90, %s91
      %p93 = scmp.eq.s32.totalorder %s92, 0
      %s95 = sadd.s32 %s94, 1
      %s96 = scalar_select %p93, %s94, %s95
      %p99 = pneg %p93
      %p100 = scmp.eq.s32.totalorder %s38, 1
      %p101 = por %p99, %p100
      %p102 = scmp.ne.s32.totalorder %s94, %s97
      %p103 = scmp.eq.s32.totalorder %s38, 0
      %p104 = por %p102, %p103
      %p105 = scmp.ne.s32.totalorder %s94, %s97
      %p106 = scmp.eq.s32.totalorder %s43, 1
      %p107 = por %p105, %p106
      %p108 = scmp.ne.s32.totalorder %s97, %s98
      %p109 = scmp.eq.s32.totalorder %s43, 0
      %p110 = por %p108, %p109
      %p111 = scmp.ne.s32.totalorder %s97, %s98
      %p112 = scmp.eq.s32.totalorder %s44, 1
      %p113 = por %p111, %p112
      %p115 = scmp.ne.s32.totalorder %s98, %s114
      %p116 = scmp.eq.s32.totalorder %s44, 0
      %p117 = por %p115, %p116
      %p118 = scmp.le.s32.totalorder 1, %s38
      %p119 = scmp.lt.s32.totalorder %s38, 3
      %p120 = pnand %p118, %p119
      %p121 = pneg %p120
      // Predicated region
      $region9: #{tpu_custom_call.1} parent=5 // pred_check
        _
      $region10: #{tpu_custom_call.1} parent=5 // pred_check_branch
        %123 = sbr.rel (%p120) target = $region12
      $region11: #{tpu_custom_call.1} parent=5 // pred_region
        %s124 = ssub.s32 %s38, 1
      $region12: #{tpu_custom_call.1} parent=5 // pred_fallthru
        _
      %p125 = scmp.lt.s32.totalorder %s38, 2
      // Predicated region
      $region13: #{tpu_custom_call.1} parent=5 // pred_check
        %p126 = pneg %p125
      $region14: #{tpu_custom_call.1} parent=5 // pred_check_branch
        %128 = sbr.rel (%p126) target = $region16
      $region15: #{tpu_custom_call.1} parent=5 // pred_region
        // Predicated region
        $region17: #{tpu_custom_call.1} parent=15 // pred_check
          %p129 = pneg %p74
        $region18: #{tpu_custom_call.1} parent=15 // pred_check_branch
          %131 = sbr.rel (%p129) target = $region20
        $region19: #{tpu_custom_call.1} parent=15 // pred_region
          %s132 = sand.u32 %s64, 1
          %s133 = scalar_lea.sflag [#allocation9], %s132
          %s134 = sand.u32 %s64, 1
          %s135 = smul.addr %s134, 128
          %s136 = scalar_lea.vmem [#allocation8], %s135
          %s137 = sld [smem:[#allocation3 + %s46]]
          %s138 = smul.u32 8, %s45
          %s140 = ssub.s32 2048, 2048
          %141 = vsyncadd %s133, %s140
          %s142 = smul.addr %s137, 2
          %s143 = smul.addr %s138, 2
          %s144 = sadd.s32 %s142, %s143
          %s145 = smul.addr %s144, 128
          %s146 = scalar_lea.hbm %s5, %s145
          %s147 = sshll.u32 %s136, 4
          %s148 = int_to_ptr.vmem [resolvable:$true] %s147
          %153 = dma.hbm_to_vmem [thread:$0]  %s146, 2048, %s148, %s133, 256, 256, 16
        $region20: #{tpu_custom_call.1} parent=15 // pred_fallthru
          _
      $region16: #{tpu_custom_call.1} parent=5 // pred_fallthru
        _
      %p154 = scmp.le.s32.totalorder 1, %s38
      %p155 = scmp.lt.s32.totalorder %s38, 3
      %p156 = pnand %p154, %p155
      %p157 = pneg %p156
      // Predicated region
      $region21: #{tpu_custom_call.1} parent=5 // pred_check
        _
      $region22: #{tpu_custom_call.1} parent=5 // pred_check_branch
        %159 = sbr.rel (%p156) target = $region24
      $region23: #{tpu_custom_call.1} parent=5 // pred_region
        %s160 = ssub.s32 %s38, 1
        %s161 = sand.u32 %s67, 1
        %s162 = scalar_lea.sflag [#allocation9], %s161
        %s163 = sand.u32 %s67, 1
        %s164 = smul.addr %s163, 128
        %s165 = scalar_lea.vmem [#allocation8], %s164
        // Predicated region
        $region25: #{tpu_custom_call.1} parent=23 // pred_check
          %p166 = pneg %p80
        $region26: #{tpu_custom_call.1} parent=23 // pred_check_branch
          %168 = sbr.rel (%p166) target = $region28
        $region27: #{tpu_custom_call.1} parent=23 // pred_region
          %169 = dma.done %s162, 2048
        $region28: #{tpu_custom_call.1} parent=23 // pred_fallthru
          _
        %s170 = sand.u32 %s67, 1
        %s171 = scalar_lea.sflag [#allocation9], %s170
        %s172 = sand.u32 %s67, 1
        %s173 = smul.addr %s172, 128
        %s174 = scalar_lea.vmem [#allocation8], %s173
        %p175 = pneg %p80
        %p176 = pneg %p77
        %p177 = pneg %p110
        %p178 = pneg %p107
        %s179 = sand.u32 %s97, 1
        %s180 = scalar_lea.sflag [#allocation10], %s179
        %s181 = sand.u32 %s97, 1
        %s182 = smul.addr %s181, 16
        %s183 = scalar_lea.vmem [#allocation11], %s182
        %s184 = sld [smem:[#allocation3 + %s48]]
        %s185 = smul.u32 8, %s47
        %s186 = sld [smem:[#allocation4 + %s48]]
        %s187 = sld [smem:[#allocation7 + %s48]]
        %p188 = scmp.eq.s32.totalorder %s187, 1
        // Predicated region
        $region29: #{tpu_custom_call.1} parent=23 // pred_check
          %p189 = pneg %p188
        $region30: #{tpu_custom_call.1} parent=23 // pred_check_branch
          %191 = sbr.rel (%p189) target = $region32
        $region31: #{tpu_custom_call.1} parent=23 // pred_region
          %192 = vst [vmem:[%s183] sm:$0xff] -inf
          %193 = vst [vmem:[%s183 + $0x8] sm:$0xff] -inf
        $region32: #{tpu_custom_call.1} parent=23 // pred_fallthru
          _
        %s194 = sld [smem:[#allocation5 + %s48]]
        %s195 = sld [smem:[#allocation6 + %s48]]
        %s196 = sadd.s32 %s194, %s195
        %v197 = vld [vmem:[%s183] sm:$0xff]
        %v198 = vld [vmem:[%s183 + $0x8] sm:$0xff]
        %p199 = scmp.le.s32.totalorder %s194, 0
        %p200 = scmp.gt.s32.totalorder %s196, 0
        %p201 = pnand %p199, %p200
        %p202 = pneg %p201
        %v203 = vld [vmem:[%s165] ss:$8 sm:$0x3]
        %s204 = scalar_lea.vmem %s165, 16 [#allocation8]
        %v205 = vld [vmem:[%s204] ss:$8 sm:$0x3]
        %s206 = scalar_lea.vmem %s165, 32 [#allocation8]
        %v207 = vld [vmem:[%s206] ss:$8 sm:$0x3]
        %s208 = scalar_lea.vmem %s165, 48 [#allocation8]
        %v209 = vld [vmem:[%s208] ss:$8 sm:$0x3]
        %s210 = scalar_lea.vmem %s165, 64 [#allocation8]
        %v211 = vld [vmem:[%s210] ss:$8 sm:$0x3]
        %s212 = scalar_lea.vmem %s165, 80 [#allocation8]
        %v213 = vld [vmem:[%s212] ss:$8 sm:$0x3]
        %s214 = scalar_lea.vmem %s165, 96 [#allocation8]
        %v215 = vld [vmem:[%s214] ss:$8 sm:$0x3]
        %s216 = scalar_lea.vmem %s165, 112 [#allocation8]
        %v217 = vld [vmem:[%s216] ss:$8 sm:$0x3]
        %s218 = scalar_select %p202, 1, 0
        %v219 = vstv %s218
        %vm220 = vcmp.eq.s32.totalorder %v219, 1
        %v221 = vsel %vm220, %v203, -inf
        %v222 = vsel %vm220, %v205, -inf
        %v223 = vsel %vm220, %v207, -inf
        %v224 = vsel %vm220, %v209, -inf
        %v225 = vsel %vm220, %v211, -inf
        %v226 = vsel %vm220, %v213, -inf
        %v227 = vsel %vm220, %v215, -inf
        %v228 = vsel %vm220, %v217, -inf
        %v237 = vcombine.low %v221, %v222
        %v238 = vcombine.low %v223, %v224
        %v239 = vcombine.low %v225, %v226
        %v240 = vcombine.low %v227, %v228
        %v242 = vunpack.c.l.s4 1966171168
        %v243 = vunpack.c.0.s8 %v242
        %v244 = vlaneseq
        %v245 = vshrl.u32 %v244, 7
        %v246 = vsub.s32 %v243, %v245
        %v247 = vrot.slane %v237, %v246
        %v249 = vunpack.c.l.s4 1966171168
        %v250 = vunpack.c.0.s8 %v249
        %v251 = vlaneseq
        %v252 = vshrl.u32 %v251, 7
        %v253 = vsub.s32 %v250, %v252
        %v254 = vrot.slane %v238, %v253
        %v256 = vunpack.c.l.s4 1966171168
        %v257 = vunpack.c.0.s8 %v256
        %v258 = vlaneseq
        %v259 = vshrl.u32 %v258, 7
        %v260 = vsub.s32 %v257, %v259
        %v261 = vrot.slane %v239, %v260
        %v263 = vunpack.c.l.s4 1966171168
        %v264 = vunpack.c.0.s8 %v263
        %v265 = vlaneseq
        %v266 = vshrl.u32 %v265, 7
        %v267 = vsub.s32 %v264, %v266
        %v268 = vrot.slane %v240, %v267
        %v269 = vcombine.low %v247, %v254
        %v270 = vcombine.high %v247, %v254
        %v271 = vcombine.low %v261, %v268
        %v272 = vcombine.high %v261, %v268
        %v274 = vunpack.c.l.s4 1966171168
        %v275 = vunpack.c.0.s8 %v274
        %v276 = vlaneseq
        %v277 = vshrl.u32 %v276, 7
        %v278 = vsub.s32 %v275, %v277
        %v279 = vrot.slane %v269, %v278
        %v281 = vunpack.c.l.s4 1966171168
        %v282 = vunpack.c.0.s8 %v281
        %v283 = vlaneseq
        %v284 = vshrl.u32 %v283, 7
        %v285 = vsub.s32 %v282, %v284
        %v286 = vrot.slane %v270, %v285
        %v288 = vunpack.c.l.s4 1966171168
        %v289 = vunpack.c.0.s8 %v288
        %v290 = vlaneseq
        %v291 = vshrl.u32 %v290, 7
        %v292 = vsub.s32 %v289, %v291
        %v293 = vrot.slane %v271, %v292
        %v295 = vunpack.c.l.s4 1966171168
        %v296 = vunpack.c.0.s8 %v295
        %v297 = vlaneseq
        %v298 = vshrl.u32 %v297, 7
        %v299 = vsub.s32 %v296, %v298
        %v300 = vrot.slane %v272, %v299
        %v301 = vcombine.low %v279, %v293
        %v302 = vcombine.low %v286, %v300
        %v305 = vmax.f32 %v197, %v301
        %v306 = vmax.f32 %v198, %v302
        %p307 = scmp.le.s32.totalorder %s194, 1
        %p308 = scmp.gt.s32.totalorder %s196, 1
        %p309 = pnand %p307, %p308
        %p310 = pneg %p309
        %s311 = scalar_lea.vmem %s165, 1 [#allocation8]
        %v312 = vld [vmem:[%s311] ss:$8 sm:$0x3]
        %s313 = scalar_lea.vmem %s165, 17 [#allocation8]
        %v314 = vld [vmem:[%s313] ss:$8 sm:$0x3]
        %s315 = scalar_lea.vmem %s165, 33 [#allocation8]
        %v316 = vld [vmem:[%s315] ss:$8 sm:$0x3]
        %s317 = scalar_lea.vmem %s165, 49 [#allocation8]
        %v318 = vld [vmem:[%s317] ss:$8 sm:$0x3]
        %s319 = scalar_lea.vmem %s165, 65 [#allocation8]
        %v320 = vld [vmem:[%s319] ss:$8 sm:$0x3]
        %s321 = scalar_lea.vmem %s165, 81 [#allocation8]
        %v322 = vld [vmem:[%s321] ss:$8 sm:$0x3]
        %s323 = scalar_lea.vmem %s165, 97 [#allocation8]
        %v324 = vld [vmem:[%s323] ss:$8 sm:$0x3]
        %s325 = scalar_lea.vmem %s165, 113 [#allocation8]
        %v326 = vld [vmem:[%s325] ss:$8 sm:$0x3]
        %s327 = scalar_select %p310, 1, 0
        %v328 = vstv %s327
        %vm329 = vcmp.eq.s32.totalorder %v328, 1
        %v330 = vsel %vm329, %v312, -inf
        %v331 = vsel %vm329, %v314, -inf
        %v332 = vsel %vm329, %v316, -inf
        %v333 = vsel %vm329, %v318, -inf
        %v334 = vsel %vm329, %v320, -inf
        %v335 = vsel %vm329, %v322, -inf
        %v336 = vsel %vm329, %v324, -inf
        %v337 = vsel %vm329, %v326, -inf
        %v346 = vcombine.low %v330, %v331
        %v347 = vcombine.low %v332, %v333
        %v348 = vcombine.low %v334, %v335
        %v349 = vcombine.low %v336, %v337
        %v351 = vunpack.c.l.s4 1966171168
        %v352 = vunpack.c.0.s8 %v351
        %v353 = vlaneseq
        %v354 = vshrl.u32 %v353, 7
        %v355 = vsub.s32 %v352, %v354
        %v356 = vrot.slane %v346, %v355
        %v358 = vunpack.c.l.s4 1966171168
        %v359 = vunpack.c.0.s8 %v358
        %v360 = vlaneseq
        %v361 = vshrl.u32 %v360, 7
        %v362 = vsub.s32 %v359, %v361
        %v363 = vrot.slane %v347, %v362
        %v365 = vunpack.c.l.s4 1966171168
        %v366 = vunpack.c.0.s8 %v365
        %v367 = vlaneseq
        %v368 = vshrl.u32 %v367, 7
        %v369 = vsub.s32 %v366, %v368
        %v370 = vrot.slane %v348, %v369
        %v372 = vunpack.c.l.s4 1966171168
        %v373 = vunpack.c.0.s8 %v372
        %v374 = vlaneseq
        %v375 = vshrl.u32 %v374, 7
        %v376 = vsub.s32 %v373, %v375
        %v377 = vrot.slane %v349, %v376
        %v378 = vcombine.low %v356, %v363
        %v379 = vcombine.high %v356, %v363
        %v380 = vcombine.low %v370, %v377
        %v381 = vcombine.high %v370, %v377
        %v383 = vunpack.c.l.s4 1966171168
        %v384 = vunpack.c.0.s8 %v383
        %v385 = vlaneseq
        %v386 = vshrl.u32 %v385, 7
        %v387 = vsub.s32 %v384, %v386
        %v388 = vrot.slane %v378, %v387
        %v390 = vunpack.c.l.s4 1966171168
        %v391 = vunpack.c.0.s8 %v390
        %v392 = vlaneseq
        %v393 = vshrl.u32 %v392, 7
        %v394 = vsub.s32 %v391, %v393
        %v395 = vrot.slane %v379, %v394
        %v397 = vunpack.c.l.s4 1966171168
        %v398 = vunpack.c.0.s8 %v397
        %v399 = vlaneseq
        %v400 = vshrl.u32 %v399, 7
        %v401 = vsub.s32 %v398, %v400
        %v402 = vrot.slane %v380, %v401
        %v404 = vunpack.c.l.s4 1966171168
        %v405 = vunpack.c.0.s8 %v404
        %v406 = vlaneseq
        %v407 = vshrl.u32 %v406, 7
        %v408 = vsub.s32 %v405, %v407
        %v409 = vrot.slane %v381, %v408
        %v410 = vcombine.low %v388, %v402
        %v411 = vcombine.low %v395, %v409
        %v414 = vmax.f32 %v305, %v410
        %v415 = vmax.f32 %v306, %v411
        %p416 = scmp.le.s32.totalorder %s194, 2
        %p417 = scmp.gt.s32.totalorder %s196, 2
        %p418 = pnand %p416, %p417
        %p419 = pneg %p418
        %s420 = scalar_lea.vmem %s165, 2 [#allocation8]
        %v421 = vld [vmem:[%s420] ss:$8 sm:$0x3]
        %s422 = scalar_lea.vmem %s165, 18 [#allocation8]
        %v423 = vld [vmem:[%s422] ss:$8 sm:$0x3]
        %s424 = scalar_lea.vmem %s165, 34 [#allocation8]
        %v425 = vld [vmem:[%s424] ss:$8 sm:$0x3]
        %s426 = scalar_lea.vmem %s165, 50 [#allocation8]
        %v427 = vld [vmem:[%s426] ss:$8 sm:$0x3]
        %s428 = scalar_lea.vmem %s165, 66 [#allocation8]
        %v429 = vld [vmem:[%s428] ss:$8 sm:$0x3]
        %s430 = scalar_lea.vmem %s165, 82 [#allocation8]
        %v431 = vld [vmem:[%s430] ss:$8 sm:$0x3]
        %s432 = scalar_lea.vmem %s165, 98 [#allocation8]
        %v433 = vld [vmem:[%s432] ss:$8 sm:$0x3]
        %s434 = scalar_lea.vmem %s165, 114 [#allocation8]
        %v435 = vld [vmem:[%s434] ss:$8 sm:$0x3]
        %s436 = scalar_select %p419, 1, 0
        %v437 = vstv %s436
        %vm438 = vcmp.eq.s32.totalorder %v437, 1
        %v439 = vsel %vm438, %v421, -inf
        %v440 = vsel %vm438, %v423, -inf
        %v441 = vsel %vm438, %v425, -inf
        %v442 = vsel %vm438, %v427, -inf
        %v443 = vsel %vm438, %v429, -inf
        %v444 = vsel %vm438, %v431, -inf
        %v445 = vsel %vm438, %v433, -inf
        %v446 = vsel %vm438, %v435, -inf
        %v455 = vcombine.low %v439, %v440
        %v456 = vcombine.low %v441, %v442
        %v457 = vcombine.low %v443, %v444
        %v458 = vcombine.low %v445, %v446
        %v460 = vunpack.c.l.s4 1966171168
        %v461 = vunpack.c.0.s8 %v460
        %v462 = vlaneseq
        %v463 = vshrl.u32 %v462, 7
        %v464 = vsub.s32 %v461, %v463
        %v465 = vrot.slane %v455, %v464
        %v467 = vunpack.c.l.s4 1966171168
        %v468 = vunpack.c.0.s8 %v467
        %v469 = vlaneseq
        %v470 = vshrl.u32 %v469, 7
        %v471 = vsub.s32 %v468, %v470
        %v472 = vrot.slane %v456, %v471
        %v474 = vunpack.c.l.s4 1966171168
        %v475 = vunpack.c.0.s8 %v474
        %v476 = vlaneseq
        %v477 = vshrl.u32 %v476, 7
        %v478 = vsub.s32 %v475, %v477
        %v479 = vrot.slane %v457, %v478
        %v481 = vunpack.c.l.s4 1966171168
        %v482 = vunpack.c.0.s8 %v481
        %v483 = vlaneseq
        %v484 = vshrl.u32 %v483, 7
        %v485 = vsub.s32 %v482, %v484
        %v486 = vrot.slane %v458, %v485
        %v487 = vcombine.low %v465, %v472
        %v488 = vcombine.high %v465, %v472
        %v489 = vcombine.low %v479, %v486
        %v490 = vcombine.high %v479, %v486
        %v492 = vunpack.c.l.s4 1966171168
        %v493 = vunpack.c.0.s8 %v492
        %v494 = vlaneseq
        %v495 = vshrl.u32 %v494, 7
        %v496 = vsub.s32 %v493, %v495
        %v497 = vrot.slane %v487, %v496
        %v499 = vunpack.c.l.s4 1966171168
        %v500 = vunpack.c.0.s8 %v499
        %v501 = vlaneseq
        %v502 = vshrl.u32 %v501, 7
        %v503 = vsub.s32 %v500, %v502
        %v504 = vrot.slane %v488, %v503
        %v506 = vunpack.c.l.s4 1966171168
        %v507 = vunpack.c.0.s8 %v506
        %v508 = vlaneseq
        %v509 = vshrl.u32 %v508, 7
        %v510 = vsub.s32 %v507, %v509
        %v511 = vrot.slane %v489, %v510
        %v513 = vunpack.c.l.s4 1966171168
        %v514 = vunpack.c.0.s8 %v513
        %v515 = vlaneseq
        %v516 = vshrl.u32 %v515, 7
        %v517 = vsub.s32 %v514, %v516
        %v518 = vrot.slane %v490, %v517
        %v519 = vcombine.low %v497, %v511
        %v520 = vcombine.low %v504, %v518
        %v523 = vmax.f32 %v414, %v519
        %v524 = vmax.f32 %v415, %v520
        %p525 = scmp.le.s32.totalorder %s194, 3
        %p526 = scmp.gt.s32.totalorder %s196, 3
        %p527 = pnand %p525, %p526
        %p528 = pneg %p527
        %s529 = scalar_lea.vmem %s165, 3 [#allocation8]
        %v530 = vld [vmem:[%s529] ss:$8 sm:$0x3]
        %s531 = scalar_lea.vmem %s165, 19 [#allocation8]
        %v532 = vld [vmem:[%s531] ss:$8 sm:$0x3]
        %s533 = scalar_lea.vmem %s165, 35 [#allocation8]
        %v534 = vld [vmem:[%s533] ss:$8 sm:$0x3]
        %s535 = scalar_lea.vmem %s165, 51 [#allocation8]
        %v536 = vld [vmem:[%s535] ss:$8 sm:$0x3]
        %s537 = scalar_lea.vmem %s165, 67 [#allocation8]
        %v538 = vld [vmem:[%s537] ss:$8 sm:$0x3]
        %s539 = scalar_lea.vmem %s165, 83 [#allocation8]
        %v540 = vld [vmem:[%s539] ss:$8 sm:$0x3]
        %s541 = scalar_lea.vmem %s165, 99 [#allocation8]
        %v542 = vld [vmem:[%s541] ss:$8 sm:$0x3]
        %s543 = scalar_lea.vmem %s165, 115 [#allocation8]
        %v544 = vld [vmem:[%s543] ss:$8 sm:$0x3]
        %s545 = scalar_select %p528, 1, 0
        %v546 = vstv %s545
        %vm547 = vcmp.eq.s32.totalorder %v546, 1
        %v548 = vsel %vm547, %v530, -inf
        %v549 = vsel %vm547, %v532, -inf
        %v550 = vsel %vm547, %v534, -inf
        %v551 = vsel %vm547, %v536, -inf
        %v552 = vsel %vm547, %v538, -inf
        %v553 = vsel %vm547, %v540, -inf
        %v554 = vsel %vm547, %v542, -inf
        %v555 = vsel %vm547, %v544, -inf
        %v564 = vcombine.low %v548, %v549
        %v565 = vcombine.low %v550, %v551
        %v566 = vcombine.low %v552, %v553
        %v567 = vcombine.low %v554, %v555
        %v569 = vunpack.c.l.s4 1966171168
        %v570 = vunpack.c.0.s8 %v569
        %v571 = vlaneseq
        %v572 = vshrl.u32 %v571, 7
        %v573 = vsub.s32 %v570, %v572
        %v574 = vrot.slane %v564, %v573
        %v576 = vunpack.c.l.s4 1966171168
        %v577 = vunpack.c.0.s8 %v576
        %v578 = vlaneseq
        %v579 = vshrl.u32 %v578, 7
        %v580 = vsub.s32 %v577, %v579
        %v581 = vrot.slane %v565, %v580
        %v583 = vunpack.c.l.s4 1966171168
        %v584 = vunpack.c.0.s8 %v583
        %v585 = vlaneseq
        %v586 = vshrl.u32 %v585, 7
        %v587 = vsub.s32 %v584, %v586
        %v588 = vrot.slane %v566, %v587
        %v590 = vunpack.c.l.s4 1966171168
        %v591 = vunpack.c.0.s8 %v590
        %v592 = vlaneseq
        %v593 = vshrl.u32 %v592, 7
        %v594 = vsub.s32 %v591, %v593
        %v595 = vrot.slane %v567, %v594
        %v596 = vcombine.low %v574, %v581
        %v597 = vcombine.high %v574, %v581
        %v598 = vcombine.low %v588, %v595
        %v599 = vcombine.high %v588, %v595
        %v601 = vunpack.c.l.s4 1966171168
        %v602 = vunpack.c.0.s8 %v601
        %v603 = vlaneseq
        %v604 = vshrl.u32 %v603, 7
        %v605 = vsub.s32 %v602, %v604
        %v606 = vrot.slane %v596, %v605
        %v608 = vunpack.c.l.s4 1966171168
        %v609 = vunpack.c.0.s8 %v608
        %v610 = vlaneseq
        %v611 = vshrl.u32 %v610, 7
        %v612 = vsub.s32 %v609, %v611
        %v613 = vrot.slane %v597, %v612
        %v615 = vunpack.c.l.s4 1966171168
        %v616 = vunpack.c.0.s8 %v615
        %v617 = vlaneseq
        %v618 = vshrl.u32 %v617, 7
        %v619 = vsub.s32 %v616, %v618
        %v620 = vrot.slane %v598, %v619
        %v622 = vunpack.c.l.s4 1966171168
        %v623 = vunpack.c.0.s8 %v622
        %v624 = vlaneseq
        %v625 = vshrl.u32 %v624, 7
        %v626 = vsub.s32 %v623, %v625
        %v627 = vrot.slane %v599, %v626
        %v628 = vcombine.low %v606, %v620
        %v629 = vcombine.low %v613, %v627
        %v632 = vmax.f32 %v523, %v628
        %v633 = vmax.f32 %v524, %v629
        %p634 = scmp.le.s32.totalorder %s194, 4
        %p635 = scmp.gt.s32.totalorder %s196, 4
        %p636 = pnand %p634, %p635
        %p637 = pneg %p636
        %s638 = scalar_lea.vmem %s165, 4 [#allocation8]
        %v639 = vld [vmem:[%s638] ss:$8 sm:$0x3]
        %s640 = scalar_lea.vmem %s165, 20 [#allocation8]
        %v641 = vld [vmem:[%s640] ss:$8 sm:$0x3]
        %s642 = scalar_lea.vmem %s165, 36 [#allocation8]
        %v643 = vld [vmem:[%s642] ss:$8 sm:$0x3]
        %s644 = scalar_lea.vmem %s165, 52 [#allocation8]
        %v645 = vld [vmem:[%s644] ss:$8 sm:$0x3]
        %s646 = scalar_lea.vmem %s165, 68 [#allocation8]
        %v647 = vld [vmem:[%s646] ss:$8 sm:$0x3]
        %s648 = scalar_lea.vmem %s165, 84 [#allocation8]
        %v649 = vld [vmem:[%s648] ss:$8 sm:$0x3]
        %s650 = scalar_lea.vmem %s165, 100 [#allocation8]
        %v651 = vld [vmem:[%s650] ss:$8 sm:$0x3]
        %s652 = scalar_lea.vmem %s165, 116 [#allocation8]
        %v653 = vld [vmem:[%s652] ss:$8 sm:$0x3]
        %s654 = scalar_select %p637, 1, 0
        %v655 = vstv %s654
        %vm656 = vcmp.eq.s32.totalorder %v655, 1
        %v657 = vsel %vm656, %v639, -inf
        %v658 = vsel %vm656, %v641, -inf
        %v659 = vsel %vm656, %v643, -inf
        %v660 = vsel %vm656, %v645, -inf
        %v661 = vsel %vm656, %v647, -inf
        %v662 = vsel %vm656, %v649, -inf
        %v663 = vsel %vm656, %v651, -inf
        %v664 = vsel %vm656, %v653, -inf
        %v673 = vcombine.low %v657, %v658
        %v674 = vcombine.low %v659, %v660
        %v675 = vcombine.low %v661, %v662
        %v676 = vcombine.low %v663, %v664
        %v678 = vunpack.c.l.s4 1966171168
        %v679 = vunpack.c.0.s8 %v678
        %v680 = vlaneseq
        %v681 = vshrl.u32 %v680, 7
        %v682 = vsub.s32 %v679, %v681
        %v683 = vrot.slane %v673, %v682
        %v685 = vunpack.c.l.s4 1966171168
        %v686 = vunpack.c.0.s8 %v685
        %v687 = vlaneseq
        %v688 = vshrl.u32 %v687, 7
        %v689 = vsub.s32 %v686, %v688
        %v690 = vrot.slane %v674, %v689
        %v692 = vunpack.c.l.s4 1966171168
        %v693 = vunpack.c.0.s8 %v692
        %v694 = vlaneseq
        %v695 = vshrl.u32 %v694, 7
        %v696 = vsub.s32 %v693, %v695
        %v697 = vrot.slane %v675, %v696
        %v699 = vunpack.c.l.s4 1966171168
        %v700 = vunpack.c.0.s8 %v699
        %v701 = vlaneseq
        %v702 = vshrl.u32 %v701, 7
        %v703 = vsub.s32 %v700, %v702
        %v704 = vrot.slane %v676, %v703
        %v705 = vcombine.low %v683, %v690
        %v706 = vcombine.high %v683, %v690
        %v707 = vcombine.low %v697, %v704
        %v708 = vcombine.high %v697, %v704
        %v710 = vunpack.c.l.s4 1966171168
        %v711 = vunpack.c.0.s8 %v710
        %v712 = vlaneseq
        %v713 = vshrl.u32 %v712, 7
        %v714 = vsub.s32 %v711, %v713
        %v715 = vrot.slane %v705, %v714
        %v717 = vunpack.c.l.s4 1966171168
        %v718 = vunpack.c.0.s8 %v717
        %v719 = vlaneseq
        %v720 = vshrl.u32 %v719, 7
        %v721 = vsub.s32 %v718, %v720
        %v722 = vrot.slane %v706, %v721
        %v724 = vunpack.c.l.s4 1966171168
        %v725 = vunpack.c.0.s8 %v724
        %v726 = vlaneseq
        %v727 = vshrl.u32 %v726, 7
        %v728 = vsub.s32 %v725, %v727
        %v729 = vrot.slane %v707, %v728
        %v731 = vunpack.c.l.s4 1966171168
        %v732 = vunpack.c.0.s8 %v731
        %v733 = vlaneseq
        %v734 = vshrl.u32 %v733, 7
        %v735 = vsub.s32 %v732, %v734
        %v736 = vrot.slane %v708, %v735
        %v737 = vcombine.low %v715, %v729
        %v738 = vcombine.low %v722, %v736
        %v741 = vmax.f32 %v632, %v737
        %v742 = vmax.f32 %v633, %v738
        %p743 = scmp.le.s32.totalorder %s194, 5
        %p744 = scmp.gt.s32.totalorder %s196, 5
        %p745 = pnand %p743, %p744
        %p746 = pneg %p745
        %s747 = scalar_lea.vmem %s165, 5 [#allocation8]
        %v748 = vld [vmem:[%s747] ss:$8 sm:$0x3]
        %s749 = scalar_lea.vmem %s165, 21 [#allocation8]
        %v750 = vld [vmem:[%s749] ss:$8 sm:$0x3]
        %s751 = scalar_lea.vmem %s165, 37 [#allocation8]
        %v752 = vld [vmem:[%s751] ss:$8 sm:$0x3]
        %s753 = scalar_lea.vmem %s165, 53 [#allocation8]
        %v754 = vld [vmem:[%s753] ss:$8 sm:$0x3]
        %s755 = scalar_lea.vmem %s165, 69 [#allocation8]
        %v756 = vld [vmem:[%s755] ss:$8 sm:$0x3]
        %s757 = scalar_lea.vmem %s165, 85 [#allocation8]
        %v758 = vld [vmem:[%s757] ss:$8 sm:$0x3]
        %s759 = scalar_lea.vmem %s165, 101 [#allocation8]
        %v760 = vld [vmem:[%s759] ss:$8 sm:$0x3]
        %s761 = scalar_lea.vmem %s165, 117 [#allocation8]
        %v762 = vld [vmem:[%s761] ss:$8 sm:$0x3]
        %s763 = scalar_select %p746, 1, 0
        %v764 = vstv %s763
        %vm765 = vcmp.eq.s32.totalorder %v764, 1
        %v766 = vsel %vm765, %v748, -inf
        %v767 = vsel %vm765, %v750, -inf
        %v768 = vsel %vm765, %v752, -inf
        %v769 = vsel %vm765, %v754, -inf
        %v770 = vsel %vm765, %v756, -inf
        %v771 = vsel %vm765, %v758, -inf
        %v772 = vsel %vm765, %v760, -inf
        %v773 = vsel %vm765, %v762, -inf
        %v782 = vcombine.low %v766, %v767
        %v783 = vcombine.low %v768, %v769
        %v784 = vcombine.low %v770, %v771
        %v785 = vcombine.low %v772, %v773
        %v787 = vunpack.c.l.s4 1966171168
        %v788 = vunpack.c.0.s8 %v787
        %v789 = vlaneseq
        %v790 = vshrl.u32 %v789, 7
        %v791 = vsub.s32 %v788, %v790
        %v792 = vrot.slane %v782, %v791
        %v794 = vunpack.c.l.s4 1966171168
        %v795 = vunpack.c.0.s8 %v794
        %v796 = vlaneseq
        %v797 = vshrl.u32 %v796, 7
        %v798 = vsub.s32 %v795, %v797
        %v799 = vrot.slane %v783, %v798
        %v801 = vunpack.c.l.s4 1966171168
        %v802 = vunpack.c.0.s8 %v801
        %v803 = vlaneseq
        %v804 = vshrl.u32 %v803, 7
        %v805 = vsub.s32 %v802, %v804
        %v806 = vrot.slane %v784, %v805
        %v808 = vunpack.c.l.s4 1966171168
        %v809 = vunpack.c.0.s8 %v808
        %v810 = vlaneseq
        %v811 = vshrl.u32 %v810, 7
        %v812 = vsub.s32 %v809, %v811
        %v813 = vrot.slane %v785, %v812
        %v814 = vcombine.low %v792, %v799
        %v815 = vcombine.high %v792, %v799
        %v816 = vcombine.low %v806, %v813
        %v817 = vcombine.high %v806, %v813
        %v819 = vunpack.c.l.s4 1966171168
        %v820 = vunpack.c.0.s8 %v819
        %v821 = vlaneseq
        %v822 = vshrl.u32 %v821, 7
        %v823 = vsub.s32 %v820, %v822
        %v824 = vrot.slane %v814, %v823
        %v826 = vunpack.c.l.s4 1966171168
        %v827 = vunpack.c.0.s8 %v826
        %v828 = vlaneseq
        %v829 = vshrl.u32 %v828, 7
        %v830 = vsub.s32 %v827, %v829
        %v831 = vrot.slane %v815, %v830
        %v833 = vunpack.c.l.s4 1966171168
        %v834 = vunpack.c.0.s8 %v833
        %v835 = vlaneseq
        %v836 = vshrl.u32 %v835, 7
        %v837 = vsub.s32 %v834, %v836
        %v838 = vrot.slane %v816, %v837
        %v840 = vunpack.c.l.s4 1966171168
        %v841 = vunpack.c.0.s8 %v840
        %v842 = vlaneseq
        %v843 = vshrl.u32 %v842, 7
        %v844 = vsub.s32 %v841, %v843
        %v845 = vrot.slane %v817, %v844
        %v846 = vcombine.low %v824, %v838
        %v847 = vcombine.low %v831, %v845
        %v850 = vmax.f32 %v741, %v846
        %v851 = vmax.f32 %v742, %v847
        %p852 = scmp.le.s32.totalorder %s194, 6
        %p853 = scmp.gt.s32.totalorder %s196, 6
        %p854 = pnand %p852, %p853
        %p855 = pneg %p854
        %s856 = scalar_lea.vmem %s165, 6 [#allocation8]
        %v857 = vld [vmem:[%s856] ss:$8 sm:$0x3]
        %s858 = scalar_lea.vmem %s165, 22 [#allocation8]
        %v859 = vld [vmem:[%s858] ss:$8 sm:$0x3]
        %s860 = scalar_lea.vmem %s165, 38 [#allocation8]
        %v861 = vld [vmem:[%s860] ss:$8 sm:$0x3]
        %s862 = scalar_lea.vmem %s165, 54 [#allocation8]
        %v863 = vld [vmem:[%s862] ss:$8 sm:$0x3]
        %s864 = scalar_lea.vmem %s165, 70 [#allocation8]
        %v865 = vld [vmem:[%s864] ss:$8 sm:$0x3]
        %s866 = scalar_lea.vmem %s165, 86 [#allocation8]
        %v867 = vld [vmem:[%s866] ss:$8 sm:$0x3]
        %s868 = scalar_lea.vmem %s165, 102 [#allocation8]
        %v869 = vld [vmem:[%s868] ss:$8 sm:$0x3]
        %s870 = scalar_lea.vmem %s165, 118 [#allocation8]
        %v871 = vld [vmem:[%s870] ss:$8 sm:$0x3]
        %s872 = scalar_select %p855, 1, 0
        %v873 = vstv %s872
        %vm874 = vcmp.eq.s32.totalorder %v873, 1
        %v875 = vsel %vm874, %v857, -inf
        %v876 = vsel %vm874, %v859, -inf
        %v877 = vsel %vm874, %v861, -inf
        %v878 = vsel %vm874, %v863, -inf
        %v879 = vsel %vm874, %v865, -inf
        %v880 = vsel %vm874, %v867, -inf
        %v881 = vsel %vm874, %v869, -inf
        %v882 = vsel %vm874, %v871, -inf
        %v891 = vcombine.low %v875, %v876
        %v892 = vcombine.low %v877, %v878
        %v893 = vcombine.low %v879, %v880
        %v894 = vcombine.low %v881, %v882
        %v896 = vunpack.c.l.s4 1966171168
        %v897 = vunpack.c.0.s8 %v896
        %v898 = vlaneseq
        %v899 = vshrl.u32 %v898, 7
        %v900 = vsub.s32 %v897, %v899
        %v901 = vrot.slane %v891, %v900
        %v903 = vunpack.c.l.s4 1966171168
        %v904 = vunpack.c.0.s8 %v903
        %v905 = vlaneseq
        %v906 = vshrl.u32 %v905, 7
        %v907 = vsub.s32 %v904, %v906
        %v908 = vrot.slane %v892, %v907
        %v910 = vunpack.c.l.s4 1966171168
        %v911 = vunpack.c.0.s8 %v910
        %v912 = vlaneseq
        %v913 = vshrl.u32 %v912, 7
        %v914 = vsub.s32 %v911, %v913
        %v915 = vrot.slane %v893, %v914
        %v917 = vunpack.c.l.s4 1966171168
        %v918 = vunpack.c.0.s8 %v917
        %v919 = vlaneseq
        %v920 = vshrl.u32 %v919, 7
        %v921 = vsub.s32 %v918, %v920
        %v922 = vrot.slane %v894, %v921
        %v923 = vcombine.low %v901, %v908
        %v924 = vcombine.high %v901, %v908
        %v925 = vcombine.low %v915, %v922
        %v926 = vcombine.high %v915, %v922
        %v928 = vunpack.c.l.s4 1966171168
        %v929 = vunpack.c.0.s8 %v928
        %v930 = vlaneseq
        %v931 = vshrl.u32 %v930, 7
        %v932 = vsub.s32 %v929, %v931
        %v933 = vrot.slane %v923, %v932
        %v935 = vunpack.c.l.s4 1966171168
        %v936 = vunpack.c.0.s8 %v935
        %v937 = vlaneseq
        %v938 = vshrl.u32 %v937, 7
        %v939 = vsub.s32 %v936, %v938
        %v940 = vrot.slane %v924, %v939
        %v942 = vunpack.c.l.s4 1966171168
        %v943 = vunpack.c.0.s8 %v942
        %v944 = vlaneseq
        %v945 = vshrl.u32 %v944, 7
        %v946 = vsub.s32 %v943, %v945
        %v947 = vrot.slane %v925, %v946
        %v949 = vunpack.c.l.s4 1966171168
        %v950 = vunpack.c.0.s8 %v949
        %v951 = vlaneseq
        %v952 = vshrl.u32 %v951, 7
        %v953 = vsub.s32 %v950, %v952
        %v954 = vrot.slane %v926, %v953
        %v955 = vcombine.low %v933, %v947
        %v956 = vcombine.low %v940, %v954
        %v959 = vmax.f32 %v850, %v955
        %v960 = vmax.f32 %v851, %v956
        %p961 = scmp.le.s32.totalorder %s194, 7
        %p962 = scmp.gt.s32.totalorder %s196, 7
        %p963 = pnand %p961, %p962
        %p964 = pneg %p963
        %s965 = scalar_lea.vmem %s165, 7 [#allocation8]
        %v966 = vld [vmem:[%s965] ss:$8 sm:$0x3]
        %s967 = scalar_lea.vmem %s165, 23 [#allocation8]
        %v968 = vld [vmem:[%s967] ss:$8 sm:$0x3]
        %s969 = scalar_lea.vmem %s165, 39 [#allocation8]
        %v970 = vld [vmem:[%s969] ss:$8 sm:$0x3]
        %s971 = scalar_lea.vmem %s165, 55 [#allocation8]
        %v972 = vld [vmem:[%s971] ss:$8 sm:$0x3]
        %s973 = scalar_lea.vmem %s165, 71 [#allocation8]
        %v974 = vld [vmem:[%s973] ss:$8 sm:$0x3]
        %s975 = scalar_lea.vmem %s165, 87 [#allocation8]
        %v976 = vld [vmem:[%s975] ss:$8 sm:$0x3]
        %s977 = scalar_lea.vmem %s165, 103 [#allocation8]
        %v978 = vld [vmem:[%s977] ss:$8 sm:$0x3]
        %s979 = scalar_lea.vmem %s165, 119 [#allocation8]
        %v980 = vld [vmem:[%s979] ss:$8 sm:$0x3]
        %s981 = scalar_select %p964, 1, 0
        %v982 = vstv %s981
        %vm983 = vcmp.eq.s32.totalorder %v982, 1
        %v984 = vsel %vm983, %v966, -inf
        %v985 = vsel %vm983, %v968, -inf
        %v986 = vsel %vm983, %v970, -inf
        %v987 = vsel %vm983, %v972, -inf
        %v988 = vsel %vm983, %v974, -inf
        %v989 = vsel %vm983, %v976, -inf
        %v990 = vsel %vm983, %v978, -inf
        %v991 = vsel %vm983, %v980, -inf
        %v1000 = vcombine.low %v984, %v985
        %v1001 = vcombine.low %v986, %v987
        %v1002 = vcombine.low %v988, %v989
        %v1003 = vcombine.low %v990, %v991
        %v1005 = vunpack.c.l.s4 1966171168
        %v1006 = vunpack.c.0.s8 %v1005
        %v1007 = vlaneseq
        %v1008 = vshrl.u32 %v1007, 7
        %v1009 = vsub.s32 %v1006, %v1008
        %v1010 = vrot.slane %v1000, %v1009
        %v1012 = vunpack.c.l.s4 1966171168
        %v1013 = vunpack.c.0.s8 %v1012
        %v1014 = vlaneseq
        %v1015 = vshrl.u32 %v1014, 7
        %v1016 = vsub.s32 %v1013, %v1015
        %v1017 = vrot.slane %v1001, %v1016
        %v1019 = vunpack.c.l.s4 1966171168
        %v1020 = vunpack.c.0.s8 %v1019
        %v1021 = vlaneseq
        %v1022 = vshrl.u32 %v1021, 7
        %v1023 = vsub.s32 %v1020, %v1022
        %v1024 = vrot.slane %v1002, %v1023
        %v1026 = vunpack.c.l.s4 1966171168
        %v1027 = vunpack.c.0.s8 %v1026
        %v1028 = vlaneseq
        %v1029 = vshrl.u32 %v1028, 7
        %v1030 = vsub.s32 %v1027, %v1029
        %v1031 = vrot.slane %v1003, %v1030
        %v1032 = vcombine.low %v1010, %v1017
        %v1033 = vcombine.high %v1010, %v1017
        %v1034 = vcombine.low %v1024, %v1031
        %v1035 = vcombine.high %v1024, %v1031
        %v1037 = vunpack.c.l.s4 1966171168
        %v1038 = vunpack.c.0.s8 %v1037
        %v1039 = vlaneseq
        %v1040 = vshrl.u32 %v1039, 7
        %v1041 = vsub.s32 %v1038, %v1040
        %v1042 = vrot.slane %v1032, %v1041
        %v1044 = vunpack.c.l.s4 1966171168
        %v1045 = vunpack.c.0.s8 %v1044
        %v1046 = vlaneseq
        %v1047 = vshrl.u32 %v1046, 7
        %v1048 = vsub.s32 %v1045, %v1047
        %v1049 = vrot.slane %v1033, %v1048
        %v1051 = vunpack.c.l.s4 1966171168
        %v1052 = vunpack.c.0.s8 %v1051
        %v1053 = vlaneseq
        %v1054 = vshrl.u32 %v1053, 7
        %v1055 = vsub.s32 %v1052, %v1054
        %v1056 = vrot.slane %v1034, %v1055
        %v1058 = vunpack.c.l.s4 1966171168
        %v1059 = vunpack.c.0.s8 %v1058
        %v1060 = vlaneseq
        %v1061 = vshrl.u32 %v1060, 7
        %v1062 = vsub.s32 %v1059, %v1061
        %v1063 = vrot.slane %v1035, %v1062
        %v1064 = vcombine.low %v1042, %v1056
        %v1065 = vcombine.low %v1049, %v1063
        %v1068 = vmax.f32 %v959, %v1064
        %v1069 = vmax.f32 %v960, %v1065
        %1070 = vst [vmem:[%s183] sm:$0xff] %v1068
        %1071 = vst [vmem:[%s183 + $0x8] sm:$0xff] %v1069
        %s1072 = sand.u32 %s97, 1
        %s1073 = scalar_lea.sflag [#allocation10], %s1072
        %s1074 = sand.u32 %s97, 1
        %s1075 = smul.addr %s1074, 16
        %s1076 = scalar_lea.vmem [#allocation11], %s1075
        // Predicated region
        $region33: #{tpu_custom_call.1} parent=23 // pred_check
          %p1077 = pneg %p107
        $region34: #{tpu_custom_call.1} parent=23 // pred_check_branch
          %1079 = sbr.rel (%p1077) target = $region36
        $region35: #{tpu_custom_call.1} parent=23 // pred_region
          %s1080 = sld [smem:[#allocation4 + %s48]]
          %s1082 = ssub.s32 256, 256
          %1083 = vsyncadd %s1073, %s1082
          %s1084 = smul.addr %s47, 2
          %s1085 = smul.addr %s1080, 2
          %s1086 = sadd.s32 %s1084, %s1085
          %s1087 = smul.addr %s1086, 128
          %s1088 = scalar_lea.hbm %s6, %s1087
          %s1090 = sshll.u32 %s1076, 4
          %s1091 = int_to_ptr.vmem [resolvable:$true] %s1090
          %1093 = dma.vmem_to_hbm [thread:$0]  %s1091, 256, %s1088, %s1073
        $region36: #{tpu_custom_call.1} parent=23 // pred_fallthru
          _
      $region24: #{tpu_custom_call.1} parent=5 // pred_fallthru
        _
      %p1094 = scmp.le.s32.totalorder 2, %s38
      // Predicated region
      $region37: #{tpu_custom_call.1} parent=5 // pred_check
        %p1095 = pneg %p1094
      $region38: #{tpu_custom_call.1} parent=5 // pred_check_branch
        %1097 = sbr.rel (%p1095) target = $region40
      $region39: #{tpu_custom_call.1} parent=5 // pred_region
        %s1098 = ssub.s32 %s38, 2
        // Predicated region
        $region41: #{tpu_custom_call.1} parent=39 // pred_check
          %p1099 = pneg %p113
        $region42: #{tpu_custom_call.1} parent=39 // pred_check_branch
          %1101 = sbr.rel (%p1099) target = $region44
        $region43: #{tpu_custom_call.1} parent=39 // pred_region
          %s1102 = sand.u32 %s98, 1
          %s1103 = scalar_lea.sflag [#allocation10], %s1102
          %s1104 = sand.u32 %s98, 1
          %s1105 = smul.addr %s1104, 16
          %s1106 = scalar_lea.vmem [#allocation11], %s1105
          %1107 = dma.done %s1103, 256
        $region44: #{tpu_custom_call.1} parent=39 // pred_fallthru
          _
      $region40: #{tpu_custom_call.1} parent=5 // pred_fallthru
        _
    $region6: #{tpu_custom_call.1} parent=1 // loop_footer
      %s42 = sadd.s32 1, %s38
    $region7: #{tpu_custom_call.1} parent=1 // loop_footer_branch
      %37 = sbr.rel target = $region3
    $region8: #{tpu_custom_call.1} parent=1 // loop_exit
      _
    %1108 = vsyncpa [#allocation9], 1
    %s1109 = scalar_lea.sflag [#allocation9], 1
    %1110 = vsyncpa %s1109, 1
    %1111 = vsyncpa [#allocation10], 1
    %s1112 = scalar_lea.sflag [#allocation10], 1
    %1113 = vsyncpa %s1112, 1

</llo_original>
